<compile_context>
chip_gen: v6e
topology: v6e:2x2x1
jax: 0.10.0
libtpu: 0.0.40
codegen_flags: <defaults>
</compile_context>

<pallas_src>
import functools

import jax
import jax.numpy as jnp
from jax import lax
from jax.experimental import pallas as pl
from jax.experimental.pallas import tpu as pltpu


def _rbf_kernel(gamma_ref, x_ref, ct_ref, csq_ref, xsq_ref, o_ref, *,
                rbf_type, matmul_precision):
    # gamma_ref: (1,)         SMEM scalar
    # x_ref:     (TB, F)      VMEM batch tile (f32 or bf16)
    # ct_ref:    (F, TK)      VMEM centers tile, pre-transposed
    # csq_ref:   (1, TK)      hoisted ||c||^2 row (f32)
    # xsq_ref:   (TB, 1)      hoisted ||x||^2 column (f32)
    # o_ref:     (TB, TK)     output tile (lane-dense, TK multiple of 128)
    g = gamma_ref[0]
    xc = jnp.dot(x_ref[...], ct_ref[...],
                 preferred_element_type=jnp.float32,
                 precision=matmul_precision)                       # MXU
    d2 = jnp.maximum(xsq_ref[...] + csq_ref[...] - 2.0 * xc, 0.0)  # round-off guard

    if rbf_type == "gaussian":
        out = jnp.exp(-g * d2)                                     # EUP
    elif rbf_type == "multiquadric":
        out = jnp.sqrt(1.0 + g * d2)
    else:  # inverse_multiquadric
        out = lax.rsqrt(1.0 + g * d2)                              # single EUP op

    o_ref[...] = out.astype(o_ref.dtype)


def _vmem_capacity_bytes():
    try:
        return int(pltpu.get_tpu_info().vmem_capacity_bytes)
    except Exception:
        return 64 << 20  # conservative fallback (v7x per-TC size)


def rbf_layer(x, centers, *, gamma=1.0, rbf_type="gaussian",
              block_b=512, block_k=1024,
              use_bf16_matmul=False, out_dtype=jnp.float32):
    """Pallas-TPU RBFLayer forward.

    x:       (B, F) or (F,)  float array
    centers: (K, F)          float array
    returns: (B, K)          out_dtype array
    """
    rbf_type = rbf_type.lower()
    if rbf_type not in {"gaussian", "multiquadric", "inverse_multiquadric"}:
        raise ValueError(f"invalid rbf_type: {rbf_type}")

    x = jnp.asarray(x, jnp.float32)
    centers = jnp.asarray(centers, jnp.float32)
    if x.ndim == 1:                  # mirrors torch `if x.dim() == 1: x.unsqueeze(0)`
        x = x[None, :]
    B, F = x.shape
    K, Fc = centers.shape
    assert F == Fc, "in_features mismatch between x and centers"

    # ---- layout plumbing (all outside the kernel loop) -----------------------
    # Pad K up to a multiple of 128 only when needed -> lane-dense stores,
    # and skip the output slice/copy when already aligned.
    pad_k = (-K) % 128
    K_pad = K + pad_k
    centers_t = centers.T                               # (F, K) contraction-major
    if pad_k:
        centers_t = jnp.pad(centers_t, ((0, 0), (0, pad_k)))

    # Pad B up to a multiple of 8 (only when B > 8 and ragged) so the last
    # batch tile's stores are unmasked.
    pad_b = (-B) % 8 if (B > 8 and B % 8 != 0) else 0
    B_pad = B + pad_b
    x_p = jnp.pad(x, ((0, pad_b), (0, 0))) if pad_b else x

    # Hoist both squared norms out of the per-step body (computed once, f32).
    c_sq = jnp.sum(centers_t * centers_t, axis=0, keepdims=True)   # (1, K_pad)
    x_sq = jnp.sum(x_p * x_p, axis=-1, keepdims=True)              # (B_pad, 1)
    gamma_arr = jnp.full((1,), float(gamma), jnp.float32)

    if use_bf16_matmul:
        matmul_dtype = jnp.bfloat16
        matmul_precision = lax.Precision.DEFAULT
    else:
        matmul_dtype = jnp.float32
        matmul_precision = lax.Precision.HIGHEST   # guards the cancellation in d2
    x_in = x_p.astype(matmul_dtype)
    ct_in = centers_t.astype(matmul_dtype)

    # ---- tile sizes vs generation-aware VMEM budget --------------------------
    block_b = min(int(block_b), B_pad)
    if block_b < B_pad:                  # partial-covering tile must be 8-aligned
        block_b = max(8, (block_b // 8) * 8)
    block_k = min(max(128, (int(block_k) // 128) * 128), K_pad)

    in_bytes = jnp.dtype(matmul_dtype).itemsize
    out_bytes = jnp.dtype(out_dtype).itemsize

    def _footprint(bb, bk):
        # Double-buffered per-step VMEM: x tile, centers tile, csq, xsq, output.
        return 2 * (bb * F * in_bytes + F * bk * in_bytes
                    + bk * 4 + bb * 4 + bb * bk * out_bytes)

    vmem_capacity = _vmem_capacity_bytes()      # 128 MiB v5e/v6e, 64 MiB v7x
    budget = int(0.6 * vmem_capacity)           # headroom for compiler scratch
    while _footprint(block_b, block_k) > budget and (block_k > 128 or block_b > 8):
        if block_k >= block_b and block_k > 128:
            block_k = max(128, block_k // 2)
        elif block_b > 8:
            block_b = max(8, ((block_b // 2) // 8) * 8)
        else:
            block_k = max(128, block_k // 2)
    # TODO(synk): for very large F (where even 8x128 tiles blow the budget),
    # add an F-reduction grid axis with an f32 VMEM accumulator and
    # pl.when init/finalize instead of shrinking the lane-dense output tile.

    grid_b = pl.cdiv(B_pad, block_b)
    grid_k = pl.cdiv(K_pad, block_k)

    # ---- grid order: minimize re-fetch traffic, tie-break batch-first --------
    # batch-outer: x resident, centers re-streamed (grid_b-1) times.
    # k-outer:     centers resident, x re-streamed (grid_k-1) times.
    refetch_batch_outer = (grid_b - 1) * K_pad * F
    refetch_k_outer = (grid_k - 1) * B_pad * F
    batch_outer = refetch_batch_outer <= refetch_k_outer

    if batch_outer:
        grid = (grid_b, grid_k)
        x_map = lambda i, j: (i, 0)
        c_map = lambda i, j: (0, j)
        o_map = lambda i, j: (i, j)
    else:
        grid = (grid_k, grid_b)
        x_map = lambda j, i: (i, 0)
        c_map = lambda j, i: (0, j)
        o_map = lambda j, i: (i, j)

    vmem_limit = min(int(0.85 * vmem_capacity),
                     max(32 << 20, 2 * _footprint(block_b, block_k)))

    kernel = functools.partial(_rbf_kernel, rbf_type=rbf_type,
                               matmul_precision=matmul_precision)

    out = pl.pallas_call(
        kernel,
        out_shape=jax.ShapeDtypeStruct((B_pad, K_pad), out_dtype),
        grid_spec=pltpu.PrefetchScalarGridSpec(
            num_scalar_prefetch=0,
            grid=grid,
            in_specs=[
                pl.BlockSpec(memory_space=pltpu.MemorySpace.SMEM),   # gamma
                pl.BlockSpec((block_b, F), x_map),                   # x tile
                pl.BlockSpec((F, block_k), c_map),                   # centers^T tile
                pl.BlockSpec((1, block_k), c_map),                   # ||c||^2 row
                pl.BlockSpec((block_b, 1), x_map),                   # ||x||^2 col
            ],
            out_specs=pl.BlockSpec((block_b, block_k), o_map),
        ),
        compiler_params=pltpu.CompilerParams(
            dimension_semantics=("parallel", "parallel"),
            vmem_limit_bytes=vmem_limit,
        ),
    )(gamma_arr, x_in, ct_in, c_sq, x_sq)

    if pad_b or pad_k:
        out = out[:B, :K]
    return out


def _make_centers(in_features, out_features):
    # Matches torch.linspace(-1, 1, out_features).reshape(-1, 1).repeat(1, in_features)
    c = jnp.linspace(-1.0, 1.0, out_features, dtype=jnp.float32).reshape(-1, 1)
    return jnp.tile(c, (1, in_features))


def _reference(x, centers, gamma, rbf_type):
    # Direct translation of the PyTorch forward (pure JAX, for validation).
    if x.ndim == 1:
        x = x[None, :]
    diff = x[:, None, :] - centers[None, :, :]
    d2 = jnp.sum(diff * diff, axis=-1)
    if rbf_type == "gaussian":
        return jnp.exp(-gamma * d2)
    elif rbf_type == "multiquadric":
        return jnp.sqrt(1.0 + gamma * d2)
    else:
        return 1.0 / jnp.sqrt(1.0 + gamma * d2)


if __name__ == "__main__":
    in_features = 32
    out_features = 16
    batch = 16
    gamma = 1.5

    key = jax.random.PRNGKey(0)
    x = jax.random.normal(key, (batch, in_features), dtype=jnp.float32)
    centers = _make_centers(in_features, out_features)

    ok = True

    # f32 path: all three RBF types (K=16 exercises the K-padding path).
    for rbf_type in ("gaussian", "multiquadric", "inverse_multiquadric"):
        out = jax.block_until_ready(
            rbf_layer(x, centers, gamma=gamma, rbf_type=rbf_type))
        ref = _reference(x, centers, gamma, rbf_type)
        ok &= out.shape == (batch, out_features)
        ok &= bool(jnp.allclose(out, ref, atol=1e-4, rtol=1e-4))

    # Ragged batch (B=13 > 8, not multiple of 8) exercises the B-padding path.
    x13 = x[:13]
    out13 = jax.block_until_ready(
        rbf_layer(x13, centers, gamma=gamma, rbf_type="gaussian"))
    ok &= out13.shape == (13, out_features)
    ok &= bool(jnp.allclose(out13, _reference(x13, centers, gamma, "gaussian"),
                            atol=1e-4, rtol=1e-4))

    # 1-D input path (mirrors torch unsqueeze behaviour).
    out1 = jax.block_until_ready(
        rbf_layer(x[0], centers, gamma=gamma, rbf_type="gaussian"))
    ok &= out1.shape == (1, out_features)
    ok &= bool(jnp.allclose(out1, _reference(x[0], centers, gamma, "gaussian"),
                            atol=1e-4, rtol=1e-4))

    # bf16 matmul / bf16 output fast path: verify it compiles, runs, is finite.
    out_bf = jax.block_until_ready(
        rbf_layer(x, centers, gamma=gamma, rbf_type="gaussian",
                  use_bf16_matmul=True, out_dtype=jnp.bfloat16))
    ok &= out_bf.shape == (batch, out_features)
    ok &= out_bf.dtype == jnp.bfloat16
    ok &= bool(jnp.all(jnp.isfinite(out_bf.astype(jnp.float32))))

    if ok:
        print("KERNEL_OK")
</pallas_src>

<mosaic_0001>
module attributes {stable_mosaic.version = 11 : i64} {
  func.func @_rbf_kernel(%arg0: i32, %arg1: i32, %arg2: memref<1xf32, #tpu.memory_space<smem>>, %arg3: memref<16x32xf32, #tpu.memory_space<vmem>>, %arg4: memref<32x128xf32, #tpu.memory_space<vmem>>, %arg5: memref<1x128xf32, #tpu.memory_space<vmem>>, %arg6: memref<16x1xf32, #tpu.memory_space<vmem>>, %arg7: memref<16x128xf32, #tpu.memory_space<vmem>>) attributes {dimension_semantics = [#tpu.dimension_semantics<parallel>, #tpu.dimension_semantics<parallel>], iteration_bounds = array<i64: 1, 1>, scalar_prefetch = 0 : i64, scratch_operands = 0 : i64, tpu.core_type = #tpu.core_type<tc>, window_params = [{transform_indices = @transform_0, window_bounds = array<i64: 1>}, {transform_indices = @transform_1, window_bounds = array<i64: 16, 32>}, {transform_indices = @transform_2, window_bounds = array<i64: 32, 128>}, {transform_indices = @transform_3, window_bounds = array<i64: 1, 128>}, {transform_indices = @transform_4, window_bounds = array<i64: 16, 1>}, {transform_indices = @transform_5, window_bounds = array<i64: 16, 128>}]} {
    %c0 = arith.constant 0 : index
    %0 = memref.load %arg2[%c0] : memref<1xf32, #tpu.memory_space<smem>>
    %c0_0 = arith.constant 0 : index
    %c0_1 = arith.constant 0 : index
    %1 = vector.load %arg3[%c0_0, %c0_1] : memref<16x32xf32, #tpu.memory_space<vmem>>, vector<16x32xf32>
    %c0_2 = arith.constant 0 : index
    %c0_3 = arith.constant 0 : index
    %2 = vector.load %arg4[%c0_2, %c0_3] : memref<32x128xf32, #tpu.memory_space<vmem>>, vector<32x128xf32>
    %cst = arith.constant dense<0.000000e+00> : vector<16x128xf32>
    %3 = tpu.matmul %1, %2, %cst {dimension_numbers = #tpu.dot_dimension_numbers<[1], [0], [0], [1], [0, 0, 1, 1], [], []>, precision = #tpu.contract_precision<fp32>} : vector<16x32xf32>, vector<32x128xf32>, vector<16x128xf32> -> vector<16x128xf32>
    %c0_4 = arith.constant 0 : index
    %c0_5 = arith.constant 0 : index
    %4 = vector.load %arg6[%c0_4, %c0_5] : memref<16x1xf32, #tpu.memory_space<vmem>>, vector<16x1xf32>
    %c0_6 = arith.constant 0 : index
    %c0_7 = arith.constant 0 : index
    %5 = vector.load %arg5[%c0_6, %c0_7] : memref<1x128xf32, #tpu.memory_space<vmem>>, vector<1x128xf32>
    %6 = vector.broadcast %4 : vector<16x1xf32> to vector<16x128xf32>
    %7 = vector.broadcast %5 : vector<1x128xf32> to vector<16x128xf32>
    %8 = arith.addf %6, %7 : vector<16x128xf32>
    %cst_8 = arith.constant 2.000000e+00 : f32
    %9 = vector.broadcast %cst_8 : f32 to vector<16x128xf32>
    %10 = arith.mulf %9, %3 : vector<16x128xf32>
    %11 = arith.subf %8, %10 : vector<16x128xf32>
    %cst_9 = arith.constant 0.000000e+00 : f32
    %12 = vector.broadcast %cst_9 : f32 to vector<16x128xf32>
    %13 = arith.maximumf %11, %12 : vector<16x128xf32>
    %cst_10 = arith.constant 0.000000e+00 : f32
    %14 = arith.subf %cst_10, %0 : f32
    %15 = vector.broadcast %14 : f32 to vector<16x128xf32>
    %16 = arith.mulf %15, %13 : vector<16x128xf32>
    %17 = math.exp %16 : vector<16x128xf32>
    %c0_11 = arith.constant 0 : index
    %c0_12 = arith.constant 0 : index
    %18 = vector.load %arg7[%c0_11, %c0_12] : memref<16x128xf32, #tpu.memory_space<vmem>>, vector<16x128xf32>
    tpu.vector_store %arg7[%c0_11, %c0_12], %17 {strides = array<i32>} : memref<16x128xf32, #tpu.memory_space<vmem>>, vector<16x128xf32>,
    return
  }
  func.func @transform_0(%arg0: i32, %arg1: i32) -> i32 {
    %c0_i32 = arith.constant 0 : i32
    %c0_i32_0 = arith.constant 0 : i32
    return %c0_i32 : i32
  }
  func.func @transform_1(%arg0: i32, %arg1: i32) -> (i32, i32) {
    %c0_i32 = arith.constant 0 : i32
    %c0_i32_0 = arith.constant 0 : i32
    return %arg0, %c0_i32 : i32, i32
  }
  func.func @transform_2(%arg0: i32, %arg1: i32) -> (i32, i32) {
    %c0_i32 = arith.constant 0 : i32
    %c0_i32_0 = arith.constant 0 : i32
    return %c0_i32, %arg1 : i32, i32
  }
  func.func @transform_3(%arg0: i32, %arg1: i32) -> (i32, i32) {
    %c0_i32 = arith.constant 0 : i32
    %c0_i32_0 = arith.constant 0 : i32
    return %c0_i32, %arg1 : i32, i32
  }
  func.func @transform_4(%arg0: i32, %arg1: i32) -> (i32, i32) {
    %c0_i32 = arith.constant 0 : i32
    %c0_i32_0 = arith.constant 0 : i32
    return %arg0, %c0_i32 : i32, i32
  }
  func.func @transform_5(%arg0: i32, %arg1: i32) -> (i32, i32) {
    %c0_i32 = arith.constant 0 : i32
    return %arg0, %arg1 : i32, i32
  }
}

</mosaic_0001>

<llo_original>
// kernel: tpu_custom_call.1
$region0: #{tpu_custom_call.1}
  #allocation0 [shape = 'u32[]', space=smem, size = 0x4, offset = 0x4, fixed_abs, tag = 'smem constant byte address 0x4 - core index']
  #allocation1 [shape = 'u32[144,128]{1,0:T(1,128)}', space=vmem, size = 0x12000, scoped, tag = 'internal scratch']
  #allocation2 [shape = 'f32[1]{0:T(128)S(6)}', space=smem, size = 0x200, scoped, tag = 'scoped memory for tpu_custom_call.1']
  %s0 = inlined_call_operand.<no memory space> [shape: f32[1], index: 0, kind: input, shape index: {}]
  %s1 = inlined_call_operand.vmem [shape: f32[16,32], index: 1, kind: input, shape index: {}]
  %s2 = inlined_call_operand.hbm [shape: f32[32,128], index: 2, kind: input, shape index: {}]
  %s3 = inlined_call_operand.vmem [shape: f32[1,128], index: 3, kind: input, shape index: {}]
  %s4 = inlined_call_operand.vmem [shape: f32[16,1], index: 4, kind: input, shape index: {}]
  %s5 = inlined_call_operand.hbm [shape: f32[16,128], index: 5, kind: output, shape index: {}]
  %s6 = sld [smem:[#allocation0]]
  $region34: #{tpu_custom_call.1} parent=0
    _
  %s8 = ssub.s32 1, %s6
  %s9 = scalar_select 0, %s8, %s6
  %10 = sst [smem:[#allocation2]] %s0
  $region1: #{tpu_custom_call.1} parent=0
    #allocation3 [shape = 'u8[16384]{0}', space=vmem, size = 0x4000, scoped, tag = 'input window, operand 2, single buffered']
    #allocation4 [shape = 's32[1]{0}', space=sflag, size = 0x4, scoped, tag = 'scoped memory for tpu_custom_call.1']
    #allocation5 [shape = 's32[1]{0}', space=sflag, size = 0x4, scoped, tag = 'scoped memory for tpu_custom_call.1']
    #allocation6 [shape = 'u8[8192]{0}', space=vmem, size = 0x2000, scoped, tag = 'output window, operand 0, single buffered']
    %11 = vsyncpa [#allocation4], 0
    %12 = vsyncpa [#allocation5], 0
    // Predicated region
    $region2: #{tpu_custom_call.1} parent=1 // pred_check
      _
    $region3: #{tpu_custom_call.1} parent=1 // pred_check_branch
      %14 = sbr.rel (0) target = $region5
    $region4: #{tpu_custom_call.1} parent=1 // pred_region
      _
    $region5: #{tpu_custom_call.1} parent=1 // pred_fallthru
      _
    // Predicated region
    $region6: #{tpu_custom_call.1} parent=1 // pred_check
      _
    $region7: #{tpu_custom_call.1} parent=1 // pred_check_branch
      %16 = sbr.rel (0) target = $region9
    $region8: #{tpu_custom_call.1} parent=1 // pred_region
      _
    $region9: #{tpu_custom_call.1} parent=1 // pred_fallthru
      _
    // Predicated region
    $region10: #{tpu_custom_call.1} parent=1 // pred_check
      _
    $region11: #{tpu_custom_call.1} parent=1 // pred_check_branch
      %18 = sbr.rel (0) target = $region13
    $region12: #{tpu_custom_call.1} parent=1 // pred_region
      %s20 = ssub.s32 512, 512
      %21 = vsyncadd [#allocation4], %s20
      %s22 = sshll.u32 [#allocation3], 4
      %s23 = int_to_ptr.vmem [resolvable:$true] %s22
      %28 = dma.hbm_to_vmem [thread:$0]  %s2, 512, %s23, [#allocation4], 128, 128, 8
    $region13: #{tpu_custom_call.1} parent=1 // pred_fallthru
      _
    // Predicated region
    $region14: #{tpu_custom_call.1} parent=1 // pred_check
      _
    $region15: #{tpu_custom_call.1} parent=1 // pred_check_branch
      %30 = sbr.rel (0) target = $region17
    $region16: #{tpu_custom_call.1} parent=1 // pred_region
      _
    $region17: #{tpu_custom_call.1} parent=1 // pred_fallthru
      _
    // Predicated region
    $region18: #{tpu_custom_call.1} parent=1 // pred_check
      _
    $region19: #{tpu_custom_call.1} parent=1 // pred_check_branch
      %32 = sbr.rel (0) target = $region21
    $region20: #{tpu_custom_call.1} parent=1 // pred_region
      _
    $region21: #{tpu_custom_call.1} parent=1 // pred_fallthru
      _
    // Predicated region
    $region22: #{tpu_custom_call.1} parent=1 // pred_check
      _
    $region23: #{tpu_custom_call.1} parent=1 // pred_check_branch
      %34 = sbr.rel (0) target = $region25
    $region24: #{tpu_custom_call.1} parent=1 // pred_region
      %35 = dma.done [#allocation4], 512
    $region25: #{tpu_custom_call.1} parent=1 // pred_fallthru
      _
    %s36 = sld [smem:[#allocation2]]
    %v37 = vld [vmem:[%s1] sm:$0xff]
    %v38 = vld [vmem:[%s1 + $0x8] sm:$0xff]
    %v39 = vld [vmem:[#allocation3] sm:$0xff]
    %v40 = vld [vmem:[#allocation3 + $0x8] sm:$0xff]
    %v41 = vld [vmem:[#allocation3 + $0x10] sm:$0xff]
    %v42 = vld [vmem:[#allocation3 + $0x18] sm:$0xff]
    %vm43 = vcmask 261120
    %v45 = vsel %vm43, %v37, 0
    %v48 = vsel %vm43, %v38, 0
    %50 = vmatprep.subr.mxu0 0.0
    %51 = vmatpush1.msra.mxu0 0.0
    %52 = vmatprep.subr.mxu0 0.0
    %53 = vmatpush1.msra.mxu0 0.0
    %54 = vmatprep.subr.mxu0 0.0
    %55 = vmatpush1.msra.mxu0 0.0
    %56 = vmatprep.subr.mxu0 0.0
    %57 = vmatpush1.msra.mxu0 0.0
    %58 = vmatprep.subr.mxu0 0.0
    %59 = vmatpush1.msra.mxu0 0.0
    %60 = vmatprep.subr.mxu0 0.0
    %61 = vmatpush1.msra.mxu0 0.0
    %62 = vmatprep.subr.mxu0 0.0
    %63 = vmatpush1.msra.mxu0 0.0
    %64 = vmatprep.subr.mxu0 0.0
    %65 = vmatpush1.msra.mxu0 0.0
    %66 = vmatprep.subr.mxu0 0.0
    %67 = vmatpush1.msra.mxu0 0.0
    %68 = vmatprep.subr.mxu0 0.0
    %69 = vmatpush1.msra.mxu0 0.0
    %70 = vmatprep.subr.mxu0 0.0
    %71 = vmatpush1.msra.mxu0 0.0
    %72 = vmatprep.subr.mxu0 0.0
    %73 = vmatpush1.msra.mxu0 0.0
    %74 = vmatprep.subr.mxu0 0.0
    %v75 = vand.u32 %v42, 4294901760
    %76 = vmatpush1.msra.mxu0 %v75
    %77 = vmatprep.subr.mxu0 0.0
    %v78 = vand.u32 %v41, 4294901760
    %79 = vmatpush1.msra.mxu0 %v78
    %80 = vmatprep.subr.mxu0 0.0
    %v81 = vand.u32 %v40, 4294901760
    %82 = vmatpush1.msra.mxu0 %v81
    %83 = vmatprep.subr.mxu0 0.0
    %v84 = vand.u32 %v39, 4294901760
    %85 = vmatpush1.msra.mxu0 %v84
    %86 = vmatprep.subr.mxu0 0.0
    %87 = vmatpush2.msra.mxu0 0.0
    %88 = vmatprep.subr.mxu0 0.0
    %89 = vmatpush2.msra.mxu0 0.0
    %90 = vmatprep.subr.mxu0 0.0
    %91 = vmatpush2.msra.mxu0 0.0
    %92 = vmatprep.subr.mxu0 0.0
    %93 = vmatpush2.msra.mxu0 0.0
    %94 = vmatprep.subr.mxu0 0.0
    %95 = vmatpush2.msra.mxu0 0.0
    %96 = vmatprep.subr.mxu0 0.0
    %97 = vmatpush2.msra.mxu0 0.0
    %98 = vmatprep.subr.mxu0 0.0
    %99 = vmatpush2.msra.mxu0 0.0
    %100 = vmatprep.subr.mxu0 0.0
    %101 = vmatpush2.msra.mxu0 0.0
    %102 = vmatprep.subr.mxu0 0.0
    %103 = vmatpush2.msra.mxu0 0.0
    %104 = vmatprep.subr.mxu0 0.0
    %105 = vmatpush2.msra.mxu0 0.0
    %106 = vmatprep.subr.mxu0 0.0
    %107 = vmatpush2.msra.mxu0 0.0
    %108 = vmatprep.subr.mxu0 0.0
    %109 = vmatpush2.msra.mxu0 0.0
    %110 = vmatprep.subr.mxu0 0.0
    %111 = vmatpush2.msra.mxu0 0.0
    %112 = vmatprep.subr.mxu0 0.0
    %113 = vmatpush2.msra.mxu0 0.0
    %114 = vmatprep.subr.mxu0 0.0
    %115 = vmatpush2.msra.mxu0 0.0
    %116 = vmatprep.subr.mxu0 0.0
    %117 = vmatpush2.msra.mxu0 0.0
    %118 = vmatprep.mubr.f32.mxu0 0.0
    %v119 = vand.u32 %v45, 4294901760
    %v120 = vsub.f32 %v45, %v119
    %v121 = vand.u32 %v120, 4294901760
    %v122 = vsub.f32 %v120, %v121
    %v123 = vand.u32 %v122, 4294901760
    %124 = vmatmul.mubr.f32.gmra.mxu0 %v123
    %v125 = vpop.f32.mrf.mxu0
    %v126 = vadd.f32 0.0, %v125
    %v127 = vpop.f32.mrf.mxu0
    %128 = vmatprep.mubr.f32.mxu0 0.0
    %v129 = vand.u32 %v48, 4294901760
    %v130 = vsub.f32 %v48, %v129
    %v131 = vand.u32 %v130, 4294901760
    %v132 = vsub.f32 %v130, %v131
    %v133 = vand.u32 %v132, 4294901760
    %134 = vmatmul.mubr.f32.gmra.mxu0 %v133
    %v135 = vpop.f32.mrf.mxu0
    %v136 = vadd.f32 0.0, %v135
    %v137 = vpop.f32.mrf.mxu0
    %138 = vdwg.mxu0
    %139 = vmatprep.subr.mxu0 0.0
    %140 = vmatpush1.msra.mxu0 0.0
    %141 = vmatprep.subr.mxu0 0.0
    %142 = vmatpush1.msra.mxu0 0.0
    %143 = vmatprep.subr.mxu0 0.0
    %144 = vmatpush1.msra.mxu0 0.0
    %145 = vmatprep.subr.mxu0 0.0
    %146 = vmatpush1.msra.mxu0 0.0
    %147 = vmatprep.subr.mxu0 0.0
    %148 = vmatpush1.msra.mxu0 0.0
    %149 = vmatprep.subr.mxu0 0.0
    %150 = vmatpush1.msra.mxu0 0.0
    %151 = vmatprep.subr.mxu0 0.0
    %152 = vmatpush1.msra.mxu0 0.0
    %153 = vmatprep.subr.mxu0 0.0
    %154 = vmatpush1.msra.mxu0 0.0
    %155 = vmatprep.subr.mxu0 0.0
    %156 = vmatpush1.msra.mxu0 0.0
    %157 = vmatprep.subr.mxu0 0.0
    %158 = vmatpush1.msra.mxu0 0.0
    %159 = vmatprep.subr.mxu0 0.0
    %160 = vmatpush1.msra.mxu0 0.0
    %161 = vmatprep.subr.mxu0 0.0
    %162 = vmatpush1.msra.mxu0 0.0
    %163 = vmatprep.subr.mxu0 0.0
    %v164 = vand.u32 %v42, 4294901760
    %v165 = vsub.f32 %v42, %v164
    %v166 = vand.u32 %v165, 4294901760
    %v167 = vsub.f32 %v165, %v166
    %v168 = vand.u32 %v167, 4294901760
    %169 = vmatpush1.msra.mxu0 %v168
    %170 = vmatprep.subr.mxu0 0.0
    %v171 = vand.u32 %v41, 4294901760
    %v172 = vsub.f32 %v41, %v171
    %v173 = vand.u32 %v172, 4294901760
    %v174 = vsub.f32 %v172, %v173
    %v175 = vand.u32 %v174, 4294901760
    %176 = vmatpush1.msra.mxu0 %v175
    %177 = vmatprep.subr.mxu0 0.0
    %v178 = vand.u32 %v40, 4294901760
    %v179 = vsub.f32 %v40, %v178
    %v180 = vand.u32 %v179, 4294901760
    %v181 = vsub.f32 %v179, %v180
    %v182 = vand.u32 %v181, 4294901760
    %183 = vmatpush1.msra.mxu0 %v182
    %184 = vmatprep.subr.mxu0 0.0
    %v185 = vand.u32 %v39, 4294901760
    %v186 = vsub.f32 %v39, %v185
    %v187 = vand.u32 %v186, 4294901760
    %v188 = vsub.f32 %v186, %v187
    %v189 = vand.u32 %v188, 4294901760
    %190 = vmatpush1.msra.mxu0 %v189
    %191 = vmatprep.subr.mxu0 0.0
    %192 = vmatpush2.msra.mxu0 0.0
    %193 = vmatprep.subr.mxu0 0.0
    %194 = vmatpush2.msra.mxu0 0.0
    %195 = vmatprep.subr.mxu0 0.0
    %196 = vmatpush2.msra.mxu0 0.0
    %197 = vmatprep.subr.mxu0 0.0
    %198 = vmatpush2.msra.mxu0 0.0
    %199 = vmatprep.subr.mxu0 0.0
    %200 = vmatpush2.msra.mxu0 0.0
    %201 = vmatprep.subr.mxu0 0.0
    %202 = vmatpush2.msra.mxu0 0.0
    %203 = vmatprep.subr.mxu0 0.0
    %204 = vmatpush2.msra.mxu0 0.0
    %205 = vmatprep.subr.mxu0 0.0
    %206 = vmatpush2.msra.mxu0 0.0
    %207 = vmatprep.subr.mxu0 0.0
    %208 = vmatpush2.msra.mxu0 0.0
    %209 = vmatprep.subr.mxu0 0.0
    %210 = vmatpush2.msra.mxu0 0.0
    %211 = vmatprep.subr.mxu0 0.0
    %212 = vmatpush2.msra.mxu0 0.0
    %213 = vmatprep.subr.mxu0 0.0
    %214 = vmatpush2.msra.mxu0 0.0
    %215 = vmatprep.subr.mxu0 0.0
    %216 = vmatpush2.msra.mxu0 0.0
    %217 = vmatprep.subr.mxu0 0.0
    %218 = vmatpush2.msra.mxu0 0.0
    %219 = vmatprep.subr.mxu0 0.0
    %220 = vmatpush2.msra.mxu0 0.0
    %221 = vmatprep.subr.mxu0 0.0
    %222 = vmatpush2.msra.mxu0 0.0
    %223 = vmatprep.mubr.f32.mxu0 0.0
    %v224 = vand.u32 %v45, 4294901760
    %225 = vmatmul.mubr.f32.gmra.mxu0 %v224
    %v226 = vpop.f32.mrf.mxu0
    %v227 = vadd.f32 %v126, %v226
    %v228 = vpop.f32.mrf.mxu0
    %229 = vmatprep.mubr.f32.mxu0 0.0
    %v230 = vand.u32 %v48, 4294901760
    %231 = vmatmul.mubr.f32.gmra.mxu0 %v230
    %v232 = vpop.f32.mrf.mxu0
    %v233 = vadd.f32 %v136, %v232
    %v234 = vpop.f32.mrf.mxu0
    %235 = vdwg.mxu0
    %236 = vmatprep.subr.mxu0 0.0
    %237 = vmatpush1.msra.mxu0 0.0
    %238 = vmatprep.subr.mxu0 0.0
    %239 = vmatpush1.msra.mxu0 0.0
    %240 = vmatprep.subr.mxu0 0.0
    %241 = vmatpush1.msra.mxu0 0.0
    %242 = vmatprep.subr.mxu0 0.0
    %243 = vmatpush1.msra.mxu0 0.0
    %244 = vmatprep.subr.mxu0 0.0
    %245 = vmatpush1.msra.mxu0 0.0
    %246 = vmatprep.subr.mxu0 0.0
    %247 = vmatpush1.msra.mxu0 0.0
    %248 = vmatprep.subr.mxu0 0.0
    %249 = vmatpush1.msra.mxu0 0.0
    %250 = vmatprep.subr.mxu0 0.0
    %251 = vmatpush1.msra.mxu0 0.0
    %252 = vmatprep.subr.mxu0 0.0
    %253 = vmatpush1.msra.mxu0 0.0
    %254 = vmatprep.subr.mxu0 0.0
    %255 = vmatpush1.msra.mxu0 0.0
    %256 = vmatprep.subr.mxu0 0.0
    %257 = vmatpush1.msra.mxu0 0.0
    %258 = vmatprep.subr.mxu0 0.0
    %259 = vmatpush1.msra.mxu0 0.0
    %260 = vmatprep.subr.mxu0 0.0
    %v261 = vand.u32 %v42, 4294901760
    %v262 = vsub.f32 %v42, %v261
    %263 = vmatpush1.msra.mxu0 %v262
    %264 = vmatprep.subr.mxu0 0.0
    %v265 = vand.u32 %v41, 4294901760
    %v266 = vsub.f32 %v41, %v265
    %267 = vmatpush1.msra.mxu0 %v266
    %268 = vmatprep.subr.mxu0 0.0
    %v269 = vand.u32 %v40, 4294901760
    %v270 = vsub.f32 %v40, %v269
    %271 = vmatpush1.msra.mxu0 %v270
    %272 = vmatprep.subr.mxu0 0.0
    %v273 = vand.u32 %v39, 4294901760
    %v274 = vsub.f32 %v39, %v273
    %275 = vmatpush1.msra.mxu0 %v274
    %276 = vmatprep.subr.mxu0 0.0
    %277 = vmatpush2.msra.mxu0 0.0
    %278 = vmatprep.subr.mxu0 0.0
    %279 = vmatpush2.msra.mxu0 0.0
    %280 = vmatprep.subr.mxu0 0.0
    %281 = vmatpush2.msra.mxu0 0.0
    %282 = vmatprep.subr.mxu0 0.0
    %283 = vmatpush2.msra.mxu0 0.0
    %284 = vmatprep.subr.mxu0 0.0
    %285 = vmatpush2.msra.mxu0 0.0
    %286 = vmatprep.subr.mxu0 0.0
    %287 = vmatpush2.msra.mxu0 0.0
    %288 = vmatprep.subr.mxu0 0.0
    %289 = vmatpush2.msra.mxu0 0.0
    %290 = vmatprep.subr.mxu0 0.0
    %291 = vmatpush2.msra.mxu0 0.0
    %292 = vmatprep.subr.mxu0 0.0
    %293 = vmatpush2.msra.mxu0 0.0
    %294 = vmatprep.subr.mxu0 0.0
    %295 = vmatpush2.msra.mxu0 0.0
    %296 = vmatprep.subr.mxu0 0.0
    %297 = vmatpush2.msra.mxu0 0.0
    %298 = vmatprep.subr.mxu0 0.0
    %299 = vmatpush2.msra.mxu0 0.0
    %300 = vmatprep.subr.mxu0 0.0
    %301 = vmatpush2.msra.mxu0 0.0
    %302 = vmatprep.subr.mxu0 0.0
    %303 = vmatpush2.msra.mxu0 0.0
    %304 = vmatprep.subr.mxu0 0.0
    %305 = vmatpush2.msra.mxu0 0.0
    %306 = vmatprep.subr.mxu0 0.0
    %307 = vmatpush2.msra.mxu0 0.0
    %308 = vmatprep.mubr.f32.mxu0 0.0
    %v309 = vand.u32 %v45, 4294901760
    %v310 = vsub.f32 %v45, %v309
    %311 = vmatmul.mubr.f32.gmra.mxu0 %v310
    %v312 = vpop.f32.mrf.mxu0
    %v313 = vadd.f32 %v227, %v312
    %v314 = vpop.f32.mrf.mxu0
    %315 = vmatprep.mubr.f32.mxu0 0.0
    %v316 = vand.u32 %v48, 4294901760
    %v317 = vsub.f32 %v48, %v316
    %318 = vmatmul.mubr.f32.gmra.mxu0 %v317
    %v319 = vpop.f32.mrf.mxu0
    %v320 = vadd.f32 %v233, %v319
    %v321 = vpop.f32.mrf.mxu0
    %322 = vdwg.mxu0
    %323 = vmatprep.subr.mxu0 0.0
    %324 = vmatpush1.msra.mxu0 0.0
    %325 = vmatprep.subr.mxu0 0.0
    %326 = vmatpush1.msra.mxu0 0.0
    %327 = vmatprep.subr.mxu0 0.0
    %328 = vmatpush1.msra.mxu0 0.0
    %329 = vmatprep.subr.mxu0 0.0
    %330 = vmatpush1.msra.mxu0 0.0
    %331 = vmatprep.subr.mxu0 0.0
    %332 = vmatpush1.msra.mxu0 0.0
    %333 = vmatprep.subr.mxu0 0.0
    %334 = vmatpush1.msra.mxu0 0.0
    %335 = vmatprep.subr.mxu0 0.0
    %336 = vmatpush1.msra.mxu0 0.0
    %337 = vmatprep.subr.mxu0 0.0
    %338 = vmatpush1.msra.mxu0 0.0
    %339 = vmatprep.subr.mxu0 0.0
    %340 = vmatpush1.msra.mxu0 0.0
    %341 = vmatprep.subr.mxu0 0.0
    %342 = vmatpush1.msra.mxu0 0.0
    %343 = vmatprep.subr.mxu0 0.0
    %344 = vmatpush1.msra.mxu0 0.0
    %345 = vmatprep.subr.mxu0 0.0
    %346 = vmatpush1.msra.mxu0 0.0
    %347 = vmatprep.subr.mxu0 0.0
    %v348 = vand.u32 %v42, 4294901760
    %349 = vmatpush1.msra.mxu0 %v348
    %350 = vmatprep.subr.mxu0 0.0
    %v351 = vand.u32 %v41, 4294901760
    %352 = vmatpush1.msra.mxu0 %v351
    %353 = vmatprep.subr.mxu0 0.0
    %v354 = vand.u32 %v40, 4294901760
    %355 = vmatpush1.msra.mxu0 %v354
    %356 = vmatprep.subr.mxu0 0.0
    %v357 = vand.u32 %v39, 4294901760
    %358 = vmatpush1.msra.mxu0 %v357
    %359 = vmatprep.subr.mxu0 0.0
    %360 = vmatpush2.msra.mxu0 0.0
    %361 = vmatprep.subr.mxu0 0.0
    %362 = vmatpush2.msra.mxu0 0.0
    %363 = vmatprep.subr.mxu0 0.0
    %364 = vmatpush2.msra.mxu0 0.0
    %365 = vmatprep.subr.mxu0 0.0
    %366 = vmatpush2.msra.mxu0 0.0
    %367 = vmatprep.subr.mxu0 0.0
    %368 = vmatpush2.msra.mxu0 0.0
    %369 = vmatprep.subr.mxu0 0.0
    %370 = vmatpush2.msra.mxu0 0.0
    %371 = vmatprep.subr.mxu0 0.0
    %372 = vmatpush2.msra.mxu0 0.0
    %373 = vmatprep.subr.mxu0 0.0
    %374 = vmatpush2.msra.mxu0 0.0
    %375 = vmatprep.subr.mxu0 0.0
    %376 = vmatpush2.msra.mxu0 0.0
    %377 = vmatprep.subr.mxu0 0.0
    %378 = vmatpush2.msra.mxu0 0.0
    %379 = vmatprep.subr.mxu0 0.0
    %380 = vmatpush2.msra.mxu0 0.0
    %381 = vmatprep.subr.mxu0 0.0
    %382 = vmatpush2.msra.mxu0 0.0
    %383 = vmatprep.subr.mxu0 0.0
    %384 = vmatpush2.msra.mxu0 0.0
    %385 = vmatprep.subr.mxu0 0.0
    %386 = vmatpush2.msra.mxu0 0.0
    %387 = vmatprep.subr.mxu0 0.0
    %388 = vmatpush2.msra.mxu0 0.0
    %389 = vmatprep.subr.mxu0 0.0
    %390 = vmatpush2.msra.mxu0 0.0
    %391 = vmatprep.mubr.f32.mxu0 0.0
    %v392 = vand.u32 %v45, 4294901760
    %v393 = vsub.f32 %v45, %v392
    %v394 = vand.u32 %v393, 4294901760
    %395 = vmatmul.mubr.f32.gmra.mxu0 %v394
    %v396 = vpop.f32.mrf.mxu0
    %v397 = vadd.f32 %v313, %v396
    %v398 = vpop.f32.mrf.mxu0
    %399 = vmatprep.mubr.f32.mxu0 0.0
    %v400 = vand.u32 %v48, 4294901760
    %v401 = vsub.f32 %v48, %v400
    %v402 = vand.u32 %v401, 4294901760
    %403 = vmatmul.mubr.f32.gmra.mxu0 %v402
    %v404 = vpop.f32.mrf.mxu0
    %v405 = vadd.f32 %v320, %v404
    %v406 = vpop.f32.mrf.mxu0
    %407 = vdwg.mxu0
    %408 = vmatprep.subr.mxu0 0.0
    %409 = vmatpush1.msra.mxu0 0.0
    %410 = vmatprep.subr.mxu0 0.0
    %411 = vmatpush1.msra.mxu0 0.0
    %412 = vmatprep.subr.mxu0 0.0
    %413 = vmatpush1.msra.mxu0 0.0
    %414 = vmatprep.subr.mxu0 0.0
    %415 = vmatpush1.msra.mxu0 0.0
    %416 = vmatprep.subr.mxu0 0.0
    %417 = vmatpush1.msra.mxu0 0.0
    %418 = vmatprep.subr.mxu0 0.0
    %419 = vmatpush1.msra.mxu0 0.0
    %420 = vmatprep.subr.mxu0 0.0
    %421 = vmatpush1.msra.mxu0 0.0
    %422 = vmatprep.subr.mxu0 0.0
    %423 = vmatpush1.msra.mxu0 0.0
    %424 = vmatprep.subr.mxu0 0.0
    %425 = vmatpush1.msra.mxu0 0.0
    %426 = vmatprep.subr.mxu0 0.0
    %427 = vmatpush1.msra.mxu0 0.0
    %428 = vmatprep.subr.mxu0 0.0
    %429 = vmatpush1.msra.mxu0 0.0
    %430 = vmatprep.subr.mxu0 0.0
    %431 = vmatpush1.msra.mxu0 0.0
    %432 = vmatprep.subr.mxu0 0.0
    %v433 = vand.u32 %v42, 4294901760
    %v434 = vsub.f32 %v42, %v433
    %v435 = vand.u32 %v434, 4294901760
    %436 = vmatpush1.msra.mxu0 %v435
    %437 = vmatprep.subr.mxu0 0.0
    %v438 = vand.u32 %v41, 4294901760
    %v439 = vsub.f32 %v41, %v438
    %v440 = vand.u32 %v439, 4294901760
    %441 = vmatpush1.msra.mxu0 %v440
    %442 = vmatprep.subr.mxu0 0.0
    %v443 = vand.u32 %v40, 4294901760
    %v444 = vsub.f32 %v40, %v443
    %v445 = vand.u32 %v444, 4294901760
    %446 = vmatpush1.msra.mxu0 %v445
    %447 = vmatprep.subr.mxu0 0.0
    %v448 = vand.u32 %v39, 4294901760
    %v449 = vsub.f32 %v39, %v448
    %v450 = vand.u32 %v449, 4294901760
    %451 = vmatpush1.msra.mxu0 %v450
    %452 = vmatprep.subr.mxu0 0.0
    %453 = vmatpush2.msra.mxu0 0.0
    %454 = vmatprep.subr.mxu0 0.0
    %455 = vmatpush2.msra.mxu0 0.0
    %456 = vmatprep.subr.mxu0 0.0
    %457 = vmatpush2.msra.mxu0 0.0
    %458 = vmatprep.subr.mxu0 0.0
    %459 = vmatpush2.msra.mxu0 0.0
    %460 = vmatprep.subr.mxu0 0.0
    %461 = vmatpush2.msra.mxu0 0.0
    %462 = vmatprep.subr.mxu0 0.0
    %463 = vmatpush2.msra.mxu0 0.0
    %464 = vmatprep.subr.mxu0 0.0
    %465 = vmatpush2.msra.mxu0 0.0
    %466 = vmatprep.subr.mxu0 0.0
    %467 = vmatpush2.msra.mxu0 0.0
    %468 = vmatprep.subr.mxu0 0.0
    %469 = vmatpush2.msra.mxu0 0.0
    %470 = vmatprep.subr.mxu0 0.0
    %471 = vmatpush2.msra.mxu0 0.0
    %472 = vmatprep.subr.mxu0 0.0
    %473 = vmatpush2.msra.mxu0 0.0
    %474 = vmatprep.subr.mxu0 0.0
    %475 = vmatpush2.msra.mxu0 0.0
    %476 = vmatprep.subr.mxu0 0.0
    %477 = vmatpush2.msra.mxu0 0.0
    %478 = vmatprep.subr.mxu0 0.0
    %479 = vmatpush2.msra.mxu0 0.0
    %480 = vmatprep.subr.mxu0 0.0
    %481 = vmatpush2.msra.mxu0 0.0
    %482 = vmatprep.subr.mxu0 0.0
    %483 = vmatpush2.msra.mxu0 0.0
    %484 = vmatprep.mubr.f32.mxu0 0.0
    %v485 = vand.u32 %v45, 4294901760
    %486 = vmatmul.mubr.f32.gmra.mxu0 %v485
    %v487 = vpop.f32.mrf.mxu0
    %v488 = vadd.f32 %v397, %v487
    %v489 = vpop.f32.mrf.mxu0
    %490 = vmatprep.mubr.f32.mxu0 0.0
    %v491 = vand.u32 %v48, 4294901760
    %492 = vmatmul.mubr.f32.gmra.mxu0 %v491
    %v493 = vpop.f32.mrf.mxu0
    %v494 = vadd.f32 %v405, %v493
    %v495 = vpop.f32.mrf.mxu0
    %496 = vdwg.mxu0
    %497 = vmatprep.subr.mxu0 0.0
    %498 = vmatpush1.msra.mxu0 0.0
    %499 = vmatprep.subr.mxu0 0.0
    %500 = vmatpush1.msra.mxu0 0.0
    %501 = vmatprep.subr.mxu0 0.0
    %502 = vmatpush1.msra.mxu0 0.0
    %503 = vmatprep.subr.mxu0 0.0
    %504 = vmatpush1.msra.mxu0 0.0
    %505 = vmatprep.subr.mxu0 0.0
    %506 = vmatpush1.msra.mxu0 0.0
    %507 = vmatprep.subr.mxu0 0.0
    %508 = vmatpush1.msra.mxu0 0.0
    %509 = vmatprep.subr.mxu0 0.0
    %510 = vmatpush1.msra.mxu0 0.0
    %511 = vmatprep.subr.mxu0 0.0
    %512 = vmatpush1.msra.mxu0 0.0
    %513 = vmatprep.subr.mxu0 0.0
    %514 = vmatpush1.msra.mxu0 0.0
    %515 = vmatprep.subr.mxu0 0.0
    %516 = vmatpush1.msra.mxu0 0.0
    %517 = vmatprep.subr.mxu0 0.0
    %518 = vmatpush1.msra.mxu0 0.0
    %519 = vmatprep.subr.mxu0 0.0
    %520 = vmatpush1.msra.mxu0 0.0
    %521 = vmatprep.subr.mxu0 0.0
    %v522 = vand.u32 %v42, 4294901760
    %523 = vmatpush1.msra.mxu0 %v522
    %524 = vmatprep.subr.mxu0 0.0
    %v525 = vand.u32 %v41, 4294901760
    %526 = vmatpush1.msra.mxu0 %v525
    %527 = vmatprep.subr.mxu0 0.0
    %v528 = vand.u32 %v40, 4294901760
    %529 = vmatpush1.msra.mxu0 %v528
    %530 = vmatprep.subr.mxu0 0.0
    %v531 = vand.u32 %v39, 4294901760
    %532 = vmatpush1.msra.mxu0 %v531
    %533 = vmatprep.subr.mxu0 0.0
    %534 = vmatpush2.msra.mxu0 0.0
    %535 = vmatprep.subr.mxu0 0.0
    %536 = vmatpush2.msra.mxu0 0.0
    %537 = vmatprep.subr.mxu0 0.0
    %538 = vmatpush2.msra.mxu0 0.0
    %539 = vmatprep.subr.mxu0 0.0
    %540 = vmatpush2.msra.mxu0 0.0
    %541 = vmatprep.subr.mxu0 0.0
    %542 = vmatpush2.msra.mxu0 0.0
    %543 = vmatprep.subr.mxu0 0.0
    %544 = vmatpush2.msra.mxu0 0.0
    %545 = vmatprep.subr.mxu0 0.0
    %546 = vmatpush2.msra.mxu0 0.0
    %547 = vmatprep.subr.mxu0 0.0
    %548 = vmatpush2.msra.mxu0 0.0
    %549 = vmatprep.subr.mxu0 0.0
    %550 = vmatpush2.msra.mxu0 0.0
    %551 = vmatprep.subr.mxu0 0.0
    %552 = vmatpush2.msra.mxu0 0.0
    %553 = vmatprep.subr.mxu0 0.0
    %554 = vmatpush2.msra.mxu0 0.0
    %555 = vmatprep.subr.mxu0 0.0
    %556 = vmatpush2.msra.mxu0 0.0
    %557 = vmatprep.subr.mxu0 0.0
    %558 = vmatpush2.msra.mxu0 0.0
    %559 = vmatprep.subr.mxu0 0.0
    %560 = vmatpush2.msra.mxu0 0.0
    %561 = vmatprep.subr.mxu0 0.0
    %562 = vmatpush2.msra.mxu0 0.0
    %563 = vmatprep.subr.mxu0 0.0
    %564 = vmatpush2.msra.mxu0 0.0
    %565 = vmatprep.mubr.f32.mxu0 0.0
    %v566 = vand.u32 %v45, 4294901760
    %567 = vmatmul.mubr.f32.gmra.mxu0 %v566
    %v568 = vpop.f32.mrf.mxu0
    %v569 = vadd.f32 %v488, %v568
    %v570 = vpop.f32.mrf.mxu0
    %571 = vmatprep.mubr.f32.mxu0 0.0
    %v572 = vand.u32 %v48, 4294901760
    %573 = vmatmul.mubr.f32.gmra.mxu0 %v572
    %v574 = vpop.f32.mrf.mxu0
    %v575 = vadd.f32 %v494, %v574
    %v576 = vpop.f32.mrf.mxu0
    %577 = vdwg.mxu0
    %v578 = vld [vmem:[%s4] sm:$0xff]
    %v579 = vld [vmem:[%s4 + $0x8] sm:$0xff]
    %v580 = vld [vmem:[%s3] sm:$0x1]
    %582 = vset.pattern.permute.xlu0 0
    %583 = vperm.xlu0 %582, %v578
    %v584 = vpop.permute.xlu0 %583
    %587 = vset.pattern.permute.xlu0 0
    %588 = vperm.xlu0 %587, %v579
    %v589 = vpop.permute.xlu0 %588
    %v592 = vlaneseq
    %v593 = vshrl.u32 %v592, 7
    %v594 = vsub.s32 0, %v593
    %v595 = vrot.slane %v580, %v594
    %v597 = vadd.f32 %v584, %v595
    %v598 = vadd.f32 %v589, %v595
    %v599 = vmul.f32 %v569, 2.0
    %v600 = vmul.f32 %v575, 2.0
    %v601 = vsub.f32 %v597, %v599
    %v602 = vsub.f32 %v598, %v600
    %v603 = vmax.f32 %v601, 0.0
    %v604 = vmax.f32 %v602, 0.0
    %s605 = ssub.f32 0.0, %s36
    %v606 = vstv %s605
    %v607 = vmul.f32 %v606, %v603
    %v608 = vmul.f32 %v606, %v604
    %v609 = vmul.f32 %v607, 1.442695
    %v610 = vpow.pop %v609
    %v611 = vmul.f32 %v608, 1.442695
    %v612 = vpow.pop %v611
    %613 = vst [vmem:[#allocation6] sm:$0xff] %v610
    %614 = vst [vmem:[#allocation6 + $0x8] sm:$0xff] %v612
    // Predicated region
    $region26: #{tpu_custom_call.1} parent=1 // pred_check
      _
    $region27: #{tpu_custom_call.1} parent=1 // pred_check_branch
      %616 = sbr.rel (0) target = $region29
    $region28: #{tpu_custom_call.1} parent=1 // pred_region
      %s618 = ssub.s32 256, 256
      %619 = vsyncadd [#allocation5], %s618
      %s620 = sshll.u32 [#allocation6], 4
      %s621 = int_to_ptr.vmem [resolvable:$true] %s620
      %626 = dma.vmem_to_hbm [thread:$0]  %s621, 256, %s5, [#allocation5], 128, 128, 8
    $region29: #{tpu_custom_call.1} parent=1 // pred_fallthru
      _
    // Predicated region
    $region30: #{tpu_custom_call.1} parent=1 // pred_check
      _
    $region31: #{tpu_custom_call.1} parent=1 // pred_check_branch
      %628 = sbr.rel (0) target = $region33
    $region32: #{tpu_custom_call.1} parent=1 // pred_region
      %629 = dma.done [#allocation5], 256
    $region33: #{tpu_custom_call.1} parent=1 // pred_fallthru
      _
    %630 = vsyncpa [#allocation4], 1
    %631 = vsyncpa [#allocation5], 1

</llo_original>
